<compile_context>
chip_gen: v7x
topology: tpu7x:2x2x1
jax: 0.10.0
libtpu: 0.0.40
codegen_flags: <defaults>
</compile_context>

<pallas_src>
import jax
import jax.numpy as jnp
from jax import lax
from jax.experimental import pallas as pl
from jax.experimental.pallas import tpu as pltpu


def _round_up(x, m):
    return ((x + m - 1) // m) * m


def _classifier_tail(u, v, w1, b1, w2, b2, out_ref):
    """feat = [u, v, |u-v|, u*v]  ->  Linear -> tanh -> Linear -> out_ref."""
    # Four D-wide pieces assembled on lanes into one (TB, 4D) operand so the first
    # Linear is a single K=4D MXU matmul.
    feat = jnp.concatenate([u, v, jnp.abs(u - v), u * v], axis=-1)
    h = jnp.tanh(jnp.dot(feat, w1, preferred_element_type=jnp.float32) + b1)
    out_ref[...] = jnp.dot(h, w2, preferred_element_type=jnp.float32) + b2


# ---------------------------------------------------------------------------
# Path A ("onehot"): small table, VMEM resident.  Gather + masked sum expressed
# as a counts @ emb MXU contraction.  No mask multiply (zero-row remap in the
# wrapper); s1 and s2 encoded together (M = 2*TB).
# ---------------------------------------------------------------------------
def _snli_onehot_kernel(ids1_ref, ids2_ref, lens_ref,
                        emb_ref, w1_ref, b1_ref, w2_ref, b2_ref, out_ref):
    TB, L = ids1_ref.shape
    V_pad, D = emb_ref.shape

    ids = jnp.concatenate([ids1_ref[...], ids2_ref[...]], axis=0)        # (2TB, L)
    vocab = lax.broadcasted_iota(jnp.int32, (2 * TB, L, V_pad), 2)
    counts = jnp.sum((ids[:, :, None] == vocab).astype(jnp.float32), axis=1)  # (2TB, V)
    summed = jnp.dot(counts, emb_ref[...],
                     preferred_element_type=jnp.float32)                 # (2TB, D)

    lens = lens_ref[...]                                                 # (TB, 2), >= 1
    u = summed[:TB, :] / lens[:, 0:1]
    v = summed[TB:, :] / lens[:, 1:2]
    _classifier_tail(u, v, w1_ref[...], b1_ref[...], w2_ref[...], b2_ref[...], out_ref)


# ---------------------------------------------------------------------------
# Path B ("dma"): table lives in HBM.  Token ids are scalar-prefetched (SMEM) and
# drive per-row async copies into a VMEM gather buffer; padding positions point
# at the all-zero table row, so the sum over L needs no mask.
# ---------------------------------------------------------------------------
def _snli_dma_kernel(ids1_smem, ids2_smem, lens_ref, emb_hbm,
                     w1_ref, b1_ref, w2_ref, b2_ref, out_ref, gbuf, sem):
    tile = pl.program_id(0)
    TB = out_ref.shape[0]
    L = ids1_smem.shape[1]
    D = emb_hbm.shape[1]
    NR = 2 * TB                                     # s1 rows then s2 rows

    def issue(ids_smem, dst_base):
        def body(k, carry):
            r = k // L
            l = k - r * L
            tok = ids_smem[tile * TB + r, l]        # SMEM scalar read
            dst = l * NR + dst_base + r             # token-major gather layout
            pltpu.make_async_copy(emb_hbm.at[pl.ds(tok, 1)],
                                  gbuf.at[pl.ds(dst, 1)],
                                  sem).start()
            return carry
        lax.fori_loop(0, TB * L, body, 0)

    # TODO(synk): at realistic TB*L, chunk the issue/drain into a double-buffered
    # pipeline instead of one burst of outstanding DMAs.
    issue(ids1_smem, 0)
    issue(ids2_smem, TB)

    def drain(k, carry):
        # Same-shaped descriptor; wait only uses the size + semaphore.
        pltpu.make_async_copy(emb_hbm.at[pl.ds(0, 1)],
                              gbuf.at[pl.ds(0, 1)],
                              sem).wait()
        return carry
    lax.fori_loop(0, NR * L, drain, 0)

    acc = jnp.zeros((NR, D), jnp.float32)
    for l in range(L):                              # static, L is small
        acc = acc + gbuf[pl.ds(l * NR, NR), :]

    lens = lens_ref[...]                            # (TB, 2), >= 1
    u = acc[:TB, :] / lens[:, 0:1]
    v = acc[TB:, :] / lens[:, 1:2]
    _classifier_tail(u, v, w1_ref[...], b1_ref[...], w2_ref[...], b2_ref[...], out_ref)


def prepare_params(params):
    """Pad/cast parameters once (hoisted out of the per-call hot path)."""
    emb = jnp.asarray(params["embedding"], jnp.float32)
    w1 = jnp.asarray(params["w1"], jnp.float32)
    b1 = jnp.asarray(params["b1"], jnp.float32).reshape(1, -1)
    w2 = jnp.asarray(params["w2"], jnp.float32)
    b2 = jnp.asarray(params["b2"], jnp.float32).reshape(1, -1)

    V, D = emb.shape
    F = w1.shape[1]
    C = w2.shape[1]
    LANE, SUB = 128, 8

    zero_row = V                                    # dedicated all-zero embedding row
    V_pad = _round_up(V + 1, SUB)
    F_pad = _round_up(F, LANE)
    C_pad = _round_up(C, LANE)                      # lane-dense output block

    # Zero padding is numerically exact: zero rows/cols contribute 0, and
    # tanh(0)=0 feeds zero rows of W2.
    emb_p = jnp.zeros((V_pad, D), jnp.float32).at[:V, :].set(emb)
    w1_p = jnp.zeros((4 * D, F_pad), jnp.float32).at[:, :F].set(w1)
    b1_p = jnp.zeros((1, F_pad), jnp.float32).at[:, :F].set(b1)
    w2_p = jnp.zeros((F_pad, C_pad), jnp.float32).at[:F, :C].set(w2)
    b2_p = jnp.zeros((1, C_pad), jnp.float32).at[:, :C].set(b2)

    return dict(emb=emb_p, w1=w1_p, b1=b1_p, w2=w2_p, b2=b2_p,
                vocab_size=V, embedding_dim=D, fc_dim=F, num_classes=C,
                zero_row=zero_row)


def snli_forward(s1, s2, s1_len, s2_len, prepared, *, batch_tile=128, gather="auto"):
    """Pallas forward pass.  `prepared` comes from prepare_params().

    gather: "auto" | "onehot" | "dma"
      onehot: VMEM-resident table, gather as counts@emb MXU contraction (tiny vocab)
      dma:    HBM table + per-token row DMA gather (realistic vocab / v7x VMEM)
    """
    emb_p, w1_p, b1_p, w2_p, b2_p = (prepared[k] for k in ("emb", "w1", "b1", "w2", "b2"))
    V = prepared["vocab_size"]
    C = prepared["num_classes"]
    zero_row = prepared["zero_row"]
    V_pad, D = emb_p.shape
    F_pad = w1_p.shape[1]
    C_pad = w2_p.shape[1]

    B, L = s1.shape
    SUB = 8
    # Clamp the tile to the padded batch so toy shapes don't over-pad; for real
    # batches the default 128 fills the MXU M dimension (use 256 on v6e/v7x).
    TB = max(SUB, min(_round_up(batch_tile, SUB), _round_up(B, SUB)))
    B_pad = _round_up(B, TB)
    num_tiles = B_pad // TB

    pos = jnp.arange(L, dtype=jnp.int32)[None, :]

    def prep_ids(ids, lens):
        ids = jnp.clip(ids.astype(jnp.int32), 0, V - 1)
        # Remap positions >= len to the all-zero row: masked sum comes for free.
        ids = jnp.where(pos < lens.astype(jnp.int32)[:, None], ids, zero_row)
        return jnp.pad(ids, ((0, B_pad - B), (0, 0)), constant_values=zero_row)

    s1_ids = prep_ids(s1, s1_len)
    s2_ids = prep_ids(s2, s2_len)
    lens = jnp.maximum(jnp.stack([s1_len, s2_len], axis=1).astype(jnp.float32), 1.0)
    lens = jnp.pad(lens, ((0, B_pad - B), (0, 0)), constant_values=1.0)

    if gather == "auto":
        table_bytes = emb_p.size * emb_p.dtype.itemsize
        gather = "onehot" if table_bytes <= (2 << 20) else "dma"

    cparams = pltpu.CompilerParams(
        dimension_semantics=("parallel",),           # shard batch tiles across TCs
        vmem_limit_bytes=48 * 1024 * 1024,           # > 16/32 MiB defaults, < v7x 64 MiB
    )
    out_shape = jax.ShapeDtypeStruct((B_pad, C_pad), jnp.float32)

    if gather == "onehot":
        out = pl.pallas_call(
            _snli_onehot_kernel,
            out_shape=out_shape,
            grid=(num_tiles,),
            in_specs=[
                pl.BlockSpec((TB, L), lambda i: (i, 0)),          # s1 ids
                pl.BlockSpec((TB, L), lambda i: (i, 0)),          # s2 ids
                pl.BlockSpec((TB, 2), lambda i: (i, 0)),          # [s1_len, s2_len]
                pl.BlockSpec((V_pad, D), lambda i: (0, 0)),       # embedding table
                pl.BlockSpec((4 * D, F_pad), lambda i: (0, 0)),   # W1
                pl.BlockSpec((1, F_pad), lambda i: (0, 0)),       # b1
                pl.BlockSpec((F_pad, C_pad), lambda i: (0, 0)),   # W2
                pl.BlockSpec((1, C_pad), lambda i: (0, 0)),       # b2
            ],
            out_specs=pl.BlockSpec((TB, C_pad), lambda i: (i, 0)),
            compiler_params=cparams,
        )(s1_ids, s2_ids, lens, emb_p, w1_p, b1_p, w2_p, b2_p)
    elif gather == "dma":
        grid_spec = pltpu.PrefetchScalarGridSpec(
            num_scalar_prefetch=2,                                # s1/s2 ids -> SMEM
            grid=(num_tiles,),
            in_specs=[
                pl.BlockSpec((TB, 2), lambda i, i1, i2: (i, 0)),        # lens
                pl.BlockSpec(memory_space=pl.ANY),                      # table stays in HBM
                pl.BlockSpec((4 * D, F_pad), lambda i, i1, i2: (0, 0)),
                pl.BlockSpec((1, F_pad), lambda i, i1, i2: (0, 0)),
                pl.BlockSpec((F_pad, C_pad), lambda i, i1, i2: (0, 0)),
                pl.BlockSpec((1, C_pad), lambda i, i1, i2: (0, 0)),
            ],
            out_specs=pl.BlockSpec((TB, C_pad), lambda i, i1, i2: (i, 0)),
            scratch_shapes=[
                pltpu.VMEM((L * 2 * TB, D), jnp.float32),               # gathered rows
                pltpu.SemaphoreType.DMA,
            ],
        )
        out = pl.pallas_call(
            _snli_dma_kernel,
            out_shape=out_shape,
            grid_spec=grid_spec,
            compiler_params=cparams,
        )(s1_ids, s2_ids, lens, emb_p, w1_p, b1_p, w2_p, b2_p)
    else:
        raise ValueError(f"unknown gather mode: {gather}")

    return out[:B, :C]


def snli_reference(s1, s2, s1_len, s2_len, params):
    emb = params["embedding"]

    def enc(tok, lens):
        e = jnp.take(emb, tok, axis=0)                                   # (B, L, D)
        p = jnp.arange(e.shape[1], dtype=jnp.float32)[None, :]
        mask = (p < lens.astype(jnp.float32)[:, None])[..., None]
        return jnp.sum(e * mask, axis=1) / lens.astype(jnp.float32)[:, None]

    u = enc(s1, s1_len)
    v = enc(s2, s2_len)
    feat = jnp.concatenate([u, v, jnp.abs(u - v), u * v], axis=1)
    h = jnp.tanh(feat @ params["w1"] + params["b1"])
    return h @ params["w2"] + params["b2"]


if __name__ == "__main__":
    vocab_size = 50
    embedding_dim = 32
    fc_dim = 32
    num_classes = 3
    B, L = 12, 8          # with batch_tile=8 below the grid has 2 steps

    key = jax.random.PRNGKey(0)
    k_emb, k_w1, k_b1, k_w2, k_b2, k_s1, k_s2, k_l1, k_l2 = jax.random.split(key, 9)

    params = {
        "embedding": jax.random.normal(k_emb, (vocab_size, embedding_dim), jnp.float32) * 0.1,
        "w1": jax.random.normal(k_w1, (4 * embedding_dim, fc_dim), jnp.float32) * 0.1,
        "b1": jax.random.normal(k_b1, (fc_dim,), jnp.float32) * 0.1,
        "w2": jax.random.normal(k_w2, (fc_dim, num_classes), jnp.float32) * 0.1,
        "b2": jax.random.normal(k_b2, (num_classes,), jnp.float32) * 0.1,
    }

    s1 = jax.random.randint(k_s1, (B, L), 0, vocab_size, dtype=jnp.int32)
    s2 = jax.random.randint(k_s2, (B, L), 0, vocab_size, dtype=jnp.int32)
    s1_len = jax.random.randint(k_l1, (B,), 1, L + 1, dtype=jnp.int32)
    s2_len = jax.random.randint(k_l2, (B,), 1, L + 1, dtype=jnp.int32)

    prepared = prepare_params(params)              # hoisted: pad once, reuse per call
    ref = snli_reference(s1, s2, s1_len, s2_len, params)

    # batch_tile=8 keeps the toy grid at 2 steps; production default is 128.
    for mode in ("onehot", "dma"):
        out = snli_forward(s1, s2, s1_len, s2_len, prepared,
                           batch_tile=8, gather=mode)
        out = jax.block_until_ready(out)
        assert out.shape == (B, num_classes), (mode, out.shape)
        assert jnp.allclose(out, ref, atol=1e-3, rtol=1e-3), (mode, out, ref)

    print("KERNEL_OK")
</pallas_src>

<mosaic_0001>
module attributes {stable_mosaic.version = 11 : i64} {
  func.func @_snli_onehot_kernel(%arg0: i32, %arg1: memref<8x8xi32, #tpu.memory_space<vmem>>, %arg2: memref<8x8xi32, #tpu.memory_space<vmem>>, %arg3: memref<8x2xf32, #tpu.memory_space<vmem>>, %arg4: memref<56x32xf32, #tpu.memory_space<vmem>>, %arg5: memref<128x128xf32, #tpu.memory_space<vmem>>, %arg6: memref<1x128xf32, #tpu.memory_space<vmem>>, %arg7: memref<128x128xf32, #tpu.memory_space<vmem>>, %arg8: memref<1x128xf32, #tpu.memory_space<vmem>>, %arg9: memref<8x128xf32, #tpu.memory_space<vmem>>) attributes {dimension_semantics = [#tpu.dimension_semantics<parallel>], iteration_bounds = array<i64: 2>, scalar_prefetch = 0 : i64, scratch_operands = 0 : i64, tpu.core_type = #tpu.core_type<tc>, window_params = [{transform_indices = @transform_0, window_bounds = array<i64: 8, 8>}, {transform_indices = @transform_1, window_bounds = array<i64: 8, 8>}, {transform_indices = @transform_2, window_bounds = array<i64: 8, 2>}, {pipeline_mode = #tpu.pipeline_mode<synchronous>, transform_indices = @transform_3, window_bounds = array<i64: 56, 32>}, {pipeline_mode = #tpu.pipeline_mode<synchronous>, transform_indices = @transform_4, window_bounds = array<i64: 128, 128>}, {pipeline_mode = #tpu.pipeline_mode<synchronous>, transform_indices = @transform_5, window_bounds = array<i64: 1, 128>}, {pipeline_mode = #tpu.pipeline_mode<synchronous>, transform_indices = @transform_6, window_bounds = array<i64: 128, 128>}, {pipeline_mode = #tpu.pipeline_mode<synchronous>, transform_indices = @transform_7, window_bounds = array<i64: 1, 128>}, {transform_indices = @transform_8, window_bounds = array<i64: 8, 128>}]} {
    %c0 = arith.constant 0 : index
    %c0_0 = arith.constant 0 : index
    %0 = vector.load %arg1[%c0, %c0_0] : memref<8x8xi32, #tpu.memory_space<vmem>>, vector<8x8xi32>
    %c0_1 = arith.constant 0 : index
    %c0_2 = arith.constant 0 : index
    %1 = vector.load %arg2[%c0_1, %c0_2] : memref<8x8xi32, #tpu.memory_space<vmem>>, vector<8x8xi32>
    %2 = tpu.concatenate %0, %1 in 0 : vector<8x8xi32>, vector<8x8xi32> -> vector<16x8xi32>
    %3 = tpu.iota {dimensions = array<i32: 2>} : vector<16x8x56xi32>
    %4 = vector.shape_cast %2 : vector<16x8xi32> to vector<16x8x1xi32>
    %5 = vector.broadcast %4 : vector<16x8x1xi32> to vector<16x8x56xi32>
    %6 = arith.cmpi eq, %5, %3 : vector<16x8x56xi32>
    %7 = arith.extui %6 : vector<16x8x56xi1> to vector<16x8x56xi32>
    %8 = arith.sitofp %7 : vector<16x8x56xi32> to vector<16x8x56xf32>
    %cst = arith.constant dense<0.000000e+00> : vector<16x56xf32>
    %9 = vector.multi_reduction <add>, %8, %cst [1] : vector<16x8x56xf32> to vector<16x56xf32>
    %c0_3 = arith.constant 0 : index
    %c0_4 = arith.constant 0 : index
    %10 = vector.load %arg4[%c0_3, %c0_4] : memref<56x32xf32, #tpu.memory_space<vmem>>, vector<56x32xf32>
    %cst_5 = arith.constant dense<0.000000e+00> : vector<16x32xf32>
    %11 = tpu.matmul %9, %10, %cst_5 {dimension_numbers = #tpu.dot_dimension_numbers<[1], [0], [0], [1], [0, 0, 1, 1], [], []>} : vector<16x56xf32>, vector<56x32xf32>, vector<16x32xf32> -> vector<16x32xf32>
    %c0_6 = arith.constant 0 : index
    %c0_7 = arith.constant 0 : index
    %12 = vector.load %arg3[%c0_6, %c0_7] : memref<8x2xf32, #tpu.memory_space<vmem>>, vector<8x2xf32>
    %13 = vector.extract_strided_slice %11 {offsets = [0, 0], sizes = [8, 32], strides = [1, 1]} : vector<16x32xf32> to vector<8x32xf32>
    %14 = vector.extract_strided_slice %12 {offsets = [0, 0], sizes = [8, 1], strides = [1, 1]} : vector<8x2xf32> to vector<8x1xf32>
    %15 = vector.broadcast %14 : vector<8x1xf32> to vector<8x32xf32>
    %16 = arith.divf %13, %15 : vector<8x32xf32>
    %17 = vector.extract_strided_slice %11 {offsets = [8, 0], sizes = [8, 32], strides = [1, 1]} : vector<16x32xf32> to vector<8x32xf32>
    %18 = vector.extract_strided_slice %12 {offsets = [0, 1], sizes = [8, 1], strides = [1, 1]} : vector<8x2xf32> to vector<8x1xf32>
    %19 = vector.broadcast %18 : vector<8x1xf32> to vector<8x32xf32>
    %20 = arith.divf %17, %19 : vector<8x32xf32>
    %c0_8 = arith.constant 0 : index
    %c0_9 = arith.constant 0 : index
    %21 = vector.load %arg5[%c0_8, %c0_9] : memref<128x128xf32, #tpu.memory_space<vmem>>, vector<128x128xf32>
    %c0_10 = arith.constant 0 : index
    %c0_11 = arith.constant 0 : index
    %22 = vector.load %arg6[%c0_10, %c0_11] : memref<1x128xf32, #tpu.memory_space<vmem>>, vector<1x128xf32>
    %c0_12 = arith.constant 0 : index
    %c0_13 = arith.constant 0 : index
    %23 = vector.load %arg7[%c0_12, %c0_13] : memref<128x128xf32, #tpu.memory_space<vmem>>, vector<128x128xf32>
    %c0_14 = arith.constant 0 : index
    %c0_15 = arith.constant 0 : index
    %24 = vector.load %arg8[%c0_14, %c0_15] : memref<1x128xf32, #tpu.memory_space<vmem>>, vector<1x128xf32>
    %25 = arith.subf %16, %20 : vector<8x32xf32>
    %26 = math.absf %25 : vector<8x32xf32>
    %27 = arith.mulf %16, %20 : vector<8x32xf32>
    %28 = tpu.concatenate %16, %20, %26, %27 in 1 : vector<8x32xf32>, vector<8x32xf32>, vector<8x32xf32>, vector<8x32xf32> -> vector<8x128xf32>
    %cst_16 = arith.constant dense<0.000000e+00> : vector<8x128xf32>
    %29 = tpu.matmul %28, %21, %cst_16 {dimension_numbers = #tpu.dot_dimension_numbers<[1], [0], [0], [1], [0, 0, 1, 1], [], []>} : vector<8x128xf32>, vector<128x128xf32>, vector<8x128xf32> -> vector<8x128xf32>
    %30 = vector.broadcast %22 : vector<1x128xf32> to vector<8x128xf32>
    %31 = arith.addf %29, %30 : vector<8x128xf32>
    %32 = math.tanh %31 : vector<8x128xf32>
    %cst_17 = arith.constant dense<0.000000e+00> : vector<8x128xf32>
    %33 = tpu.matmul %32, %23, %cst_17 {dimension_numbers = #tpu.dot_dimension_numbers<[1], [0], [0], [1], [0, 0, 1, 1], [], []>} : vector<8x128xf32>, vector<128x128xf32>, vector<8x128xf32> -> vector<8x128xf32>
    %34 = vector.broadcast %24 : vector<1x128xf32> to vector<8x128xf32>
    %35 = arith.addf %33, %34 : vector<8x128xf32>
    %c0_18 = arith.constant 0 : index
    %c0_19 = arith.constant 0 : index
    %36 = vector.load %arg9[%c0_18, %c0_19] : memref<8x128xf32, #tpu.memory_space<vmem>>, vector<8x128xf32>
    tpu.vector_store %arg9[%c0_18, %c0_19], %35 {strides = array<i32>} : memref<8x128xf32, #tpu.memory_space<vmem>>, vector<8x128xf32>,
    return
  }
  func.func @transform_0(%arg0: i32) -> (i32, i32) {
    %c0_i32 = arith.constant 0 : i32
    %c0_i32_0 = arith.constant 0 : i32
    return %arg0, %c0_i32 : i32, i32
  }
  func.func @transform_1(%arg0: i32) -> (i32, i32) {
    %c0_i32 = arith.constant 0 : i32
    %c0_i32_0 = arith.constant 0 : i32
    return %arg0, %c0_i32 : i32, i32
  }
  func.func @transform_2(%arg0: i32) -> (i32, i32) {
    %c0_i32 = arith.constant 0 : i32
    %c0_i32_0 = arith.constant 0 : i32
    return %arg0, %c0_i32 : i32, i32
  }
  func.func @transform_3(%arg0: i32) -> (i32, i32) {
    %c0_i32 = arith.constant 0 : i32
    %c0_i32_0 = arith.constant 0 : i32
    %c0_i32_1 = arith.constant 0 : i32
    return %c0_i32, %c0_i32_0 : i32, i32
  }
  func.func @transform_4(%arg0: i32) -> (i32, i32) {
    %c0_i32 = arith.constant 0 : i32
    %c0_i32_0 = arith.constant 0 : i32
    %c0_i32_1 = arith.constant 0 : i32
    return %c0_i32, %c0_i32_0 : i32, i32
  }
  func.func @transform_5(%arg0: i32) -> (i32, i32) {
    %c0_i32 = arith.constant 0 : i32
    %c0_i32_0 = arith.constant 0 : i32
    %c0_i32_1 = arith.constant 0 : i32
    return %c0_i32, %c0_i32_0 : i32, i32
  }
  func.func @transform_6(%arg0: i32) -> (i32, i32) {
    %c0_i32 = arith.constant 0 : i32
    %c0_i32_0 = arith.constant 0 : i32
    %c0_i32_1 = arith.constant 0 : i32
    return %c0_i32, %c0_i32_0 : i32, i32
  }
  func.func @transform_7(%arg0: i32) -> (i32, i32) {
    %c0_i32 = arith.constant 0 : i32
    %c0_i32_0 = arith.constant 0 : i32
    %c0_i32_1 = arith.constant 0 : i32
    return %c0_i32, %c0_i32_0 : i32, i32
  }
  func.func @transform_8(%arg0: i32) -> (i32, i32) {
    %c0_i32 = arith.constant 0 : i32
    %c0_i32_0 = arith.constant 0 : i32
    return %arg0, %c0_i32 : i32, i32
  }
}

</mosaic_0001>

<llo_original>
// kernel: tpu_custom_call.1
$region0: #{tpu_custom_call.1}
  #allocation0 [shape = 'u32[]', space=smem, size = 0x4, offset = 0x4, fixed_abs, tag = 'smem constant byte address 0x4 - core index']
  #allocation1 [shape = 'u32[144,128]{1,0:T(1,128)}', space=vmem, size = 0x12000, scoped, tag = 'internal scratch']
  %s0 = inlined_call_operand.vmem [shape: s32[16,8], index: 0, kind: input, shape index: {}]
  %s1 = inlined_call_operand.vmem [shape: s32[16,8], index: 1, kind: input, shape index: {}]
  %s2 = inlined_call_operand.vmem [shape: f32[16,2], index: 2, kind: input, shape index: {}]
  %s3 = inlined_call_operand.vmem [shape: f32[56,32], index: 3, kind: input, shape index: {}]
  %s4 = inlined_call_operand.vmem [shape: f32[128,128], index: 4, kind: input, shape index: {}]
  %s5 = inlined_call_operand.vmem [shape: f32[1,128], index: 5, kind: input, shape index: {}]
  %s6 = inlined_call_operand.hbm [shape: f32[128,128], index: 6, kind: input, shape index: {}]
  %s7 = inlined_call_operand.vmem [shape: f32[1,128], index: 7, kind: input, shape index: {}]
  %s8 = inlined_call_operand.hbm [shape: f32[16,128], index: 8, kind: output, shape index: {}]
  %s9 = sld [smem:[#allocation0]]
  $region69: #{tpu_custom_call.1} parent=0
    _
  %s11 = ssub.s32 1, %s9
  %s12 = scalar_select 0, %s11, %s9
  $region1: #{tpu_custom_call.1} parent=0
    #allocation2 [shape = 'u8[65536]{0}', space=vmem, size = 0x10000, scoped, tag = 'input window, operand 6, single buffered']
    #allocation3 [shape = 's32[2]{0}', space=sflag, size = 0x8, scoped, tag = 'scoped memory for tpu_custom_call.1']
    #allocation4 [shape = 's32[2]{0}', space=sflag, size = 0x8, scoped, tag = 'scoped memory for tpu_custom_call.1']
    #allocation5 [shape = 'u8[8192]{0}', space=vmem, size = 0x2000, scoped, tag = 'output window, operand 0']
    %13 = vsyncpa [#allocation3], 0
    %14 = vsyncpa [#allocation4], 0
    %s15 = scalar_lea.sflag [#allocation4], 1
    %16 = vsyncpa %s15, 0
    loop: start=0, step=1, limit=4
    $region2: #{tpu_custom_call.1} parent=1 // loop_pre_header
      _
    $region3: #{tpu_custom_call.1} parent=1 // loop_header
      %s18 = sphi 0, %s22
      %p19 = scmp.ge.s32.totalorder %s18, 4
      %s28 = sphi 0, %s30
      %s31 = sphi 0, %s28
      %s32 = sphi 0, %s31
      %s48 = sphi 0, %s32
      %s54 = sphi 0, %s56
      %s57 = sphi 0, %s54
      %s58 = sphi 0, %s57
      %s74 = sphi 0, %s58
      %s80 = sphi 0, %s82
      %s83 = sphi 0, %s80
      %s84 = sphi 0, %s83
      %s100 = sphi 0, %s84
      %s104 = sphi 0, %s104
      %s106 = sphi 0, %s104
      %s107 = sphi 0, %s106
      %s121 = sphi 0, %s107
      %s125 = sphi 0, %s125
      %s127 = sphi 0, %s125
      %s128 = sphi 0, %s127
      %s142 = sphi 0, %s128
      %s146 = sphi 0, %s146
      %s148 = sphi 0, %s146
      %s149 = sphi 0, %s148
      %s163 = sphi 0, %s149
      %s167 = sphi 0, %s167
      %s169 = sphi 0, %s167
      %s170 = sphi 0, %s169
      %s184 = sphi 0, %s170
      %s188 = sphi 0, %s188
      %s190 = sphi 0, %s188
      %s191 = sphi 0, %s190
      %s205 = sphi 0, %s191
      %s211 = sphi 0, %s213
      %s214 = sphi 0, %s211
      %s215 = sphi 0, %s214
      %s231 = sphi 0, %s215
    $region4: #{tpu_custom_call.1} parent=1 // loop_header_branch
      %21 = sbr.rel (%p19) target = $region8
    $region5: #{tpu_custom_call.1} parent=1 // loop_body
      %s23 = ssub.s32 %s18, 1
      %s24 = ssub.s32 %s18, 2
      %s25 = sadd.s32 %s18, 1
      %s26 = ssub.s32 %s18, %s25
      %p27 = scmp.eq.s32.totalorder %s26, 0
      %s29 = sadd.s32 %s28, 1
      %s30 = scalar_select %p27, %s28, %s29
      %p33 = pneg %p27
      %p34 = scmp.eq.s32.totalorder %s18, 1
      %p35 = por %p33, %p34
      %p36 = scmp.ne.s32.totalorder %s28, %s31
      %p37 = scmp.eq.s32.totalorder %s18, 0
      %p38 = por %p36, %p37
      %p39 = scmp.ne.s32.totalorder %s28, %s31
      %p40 = scmp.eq.s32.totalorder %s23, 1
      %p41 = por %p39, %p40
      %p42 = scmp.ne.s32.totalorder %s31, %s32
      %p43 = scmp.eq.s32.totalorder %s23, 0
      %p44 = por %p42, %p43
      %p45 = scmp.ne.s32.totalorder %s31, %s32
      %p46 = scmp.eq.s32.totalorder %s24, 1
      %p47 = por %p45, %p46
      %p49 = scmp.ne.s32.totalorder %s32, %s48
      %p50 = scmp.eq.s32.totalorder %s24, 0
      %p51 = por %p49, %p50
      %s52 = ssub.s32 %s18, %s25
      %p53 = scmp.eq.s32.totalorder %s52, 0
      %s55 = sadd.s32 %s54, 1
      %s56 = scalar_select %p53, %s54, %s55
      %p59 = pneg %p53
      %p60 = scmp.eq.s32.totalorder %s18, 1
      %p61 = por %p59, %p60
      %p62 = scmp.ne.s32.totalorder %s54, %s57
      %p63 = scmp.eq.s32.totalorder %s18, 0
      %p64 = por %p62, %p63
      %p65 = scmp.ne.s32.totalorder %s54, %s57
      %p66 = scmp.eq.s32.totalorder %s23, 1
      %p67 = por %p65, %p66
      %p68 = scmp.ne.s32.totalorder %s57, %s58
      %p69 = scmp.eq.s32.totalorder %s23, 0
      %p70 = por %p68, %p69
      %p71 = scmp.ne.s32.totalorder %s57, %s58
      %p72 = scmp.eq.s32.totalorder %s24, 1
      %p73 = por %p71, %p72
      %p75 = scmp.ne.s32.totalorder %s58, %s74
      %p76 = scmp.eq.s32.totalorder %s24, 0
      %p77 = por %p75, %p76
      %s78 = ssub.s32 %s18, %s25
      %p79 = scmp.eq.s32.totalorder %s78, 0
      %s81 = sadd.s32 %s80, 1
      %s82 = scalar_select %p79, %s80, %s81
      %p85 = pneg %p79
      %p86 = scmp.eq.s32.totalorder %s18, 1
      %p87 = por %p85, %p86
      %p88 = scmp.ne.s32.totalorder %s80, %s83
      %p89 = scmp.eq.s32.totalorder %s18, 0
      %p90 = por %p88, %p89
      %p91 = scmp.ne.s32.totalorder %s80, %s83
      %p92 = scmp.eq.s32.totalorder %s23, 1
      %p93 = por %p91, %p92
      %p94 = scmp.ne.s32.totalorder %s83, %s84
      %p95 = scmp.eq.s32.totalorder %s23, 0
      %p96 = por %p94, %p95
      %p97 = scmp.ne.s32.totalorder %s83, %s84
      %p98 = scmp.eq.s32.totalorder %s24, 1
      %p99 = por %p97, %p98
      %p101 = scmp.ne.s32.totalorder %s84, %s100
      %p102 = scmp.eq.s32.totalorder %s24, 0
      %p103 = por %p101, %p102
      %s105 = sadd.s32 %s104, 1
      %p108 = scmp.eq.s32.totalorder %s18, 1
      %p109 = scmp.ne.s32.totalorder %s104, %s106
      %p110 = scmp.eq.s32.totalorder %s18, 0
      %p111 = por %p109, %p110
      %p112 = scmp.ne.s32.totalorder %s104, %s106
      %p113 = scmp.eq.s32.totalorder %s23, 1
      %p114 = por %p112, %p113
      %p115 = scmp.ne.s32.totalorder %s106, %s107
      %p116 = scmp.eq.s32.totalorder %s23, 0
      %p117 = por %p115, %p116
      %p118 = scmp.ne.s32.totalorder %s106, %s107
      %p119 = scmp.eq.s32.totalorder %s24, 1
      %p120 = por %p118, %p119
      %p122 = scmp.ne.s32.totalorder %s107, %s121
      %p123 = scmp.eq.s32.totalorder %s24, 0
      %p124 = por %p122, %p123
      %s126 = sadd.s32 %s125, 1
      %p129 = scmp.eq.s32.totalorder %s18, 1
      %p130 = scmp.ne.s32.totalorder %s125, %s127
      %p131 = scmp.eq.s32.totalorder %s18, 0
      %p132 = por %p130, %p131
      %p133 = scmp.ne.s32.totalorder %s125, %s127
      %p134 = scmp.eq.s32.totalorder %s23, 1
      %p135 = por %p133, %p134
      %p136 = scmp.ne.s32.totalorder %s127, %s128
      %p137 = scmp.eq.s32.totalorder %s23, 0
      %p138 = por %p136, %p137
      %p139 = scmp.ne.s32.totalorder %s127, %s128
      %p140 = scmp.eq.s32.totalorder %s24, 1
      %p141 = por %p139, %p140
      %p143 = scmp.ne.s32.totalorder %s128, %s142
      %p144 = scmp.eq.s32.totalorder %s24, 0
      %p145 = por %p143, %p144
      %s147 = sadd.s32 %s146, 1
      %p150 = scmp.eq.s32.totalorder %s18, 1
      %p151 = scmp.ne.s32.totalorder %s146, %s148
      %p152 = scmp.eq.s32.totalorder %s18, 0
      %p153 = por %p151, %p152
      %p154 = scmp.ne.s32.totalorder %s146, %s148
      %p155 = scmp.eq.s32.totalorder %s23, 1
      %p156 = por %p154, %p155
      %p157 = scmp.ne.s32.totalorder %s148, %s149
      %p158 = scmp.eq.s32.totalorder %s23, 0
      %p159 = por %p157, %p158
      %p160 = scmp.ne.s32.totalorder %s148, %s149
      %p161 = scmp.eq.s32.totalorder %s24, 1
      %p162 = por %p160, %p161
      %p164 = scmp.ne.s32.totalorder %s149, %s163
      %p165 = scmp.eq.s32.totalorder %s24, 0
      %p166 = por %p164, %p165
      %s168 = sadd.s32 %s167, 1
      %p171 = scmp.eq.s32.totalorder %s18, 1
      %p172 = scmp.ne.s32.totalorder %s167, %s169
      %p173 = scmp.eq.s32.totalorder %s18, 0
      %p174 = por %p172, %p173
      %p175 = scmp.ne.s32.totalorder %s167, %s169
      %p176 = scmp.eq.s32.totalorder %s23, 1
      %p177 = por %p175, %p176
      %p178 = scmp.ne.s32.totalorder %s169, %s170
      %p179 = scmp.eq.s32.totalorder %s23, 0
      %p180 = por %p178, %p179
      %p181 = scmp.ne.s32.totalorder %s169, %s170
      %p182 = scmp.eq.s32.totalorder %s24, 1
      %p183 = por %p181, %p182
      %p185 = scmp.ne.s32.totalorder %s170, %s184
      %p186 = scmp.eq.s32.totalorder %s24, 0
      %p187 = por %p185, %p186
      %s189 = sadd.s32 %s188, 1
      %p192 = scmp.eq.s32.totalorder %s18, 1
      %p193 = scmp.ne.s32.totalorder %s188, %s190
      %p194 = scmp.eq.s32.totalorder %s18, 0
      %p195 = por %p193, %p194
      %p196 = scmp.ne.s32.totalorder %s188, %s190
      %p197 = scmp.eq.s32.totalorder %s23, 1
      %p198 = por %p196, %p197
      %p199 = scmp.ne.s32.totalorder %s190, %s191
      %p200 = scmp.eq.s32.totalorder %s23, 0
      %p201 = por %p199, %p200
      %p202 = scmp.ne.s32.totalorder %s190, %s191
      %p203 = scmp.eq.s32.totalorder %s24, 1
      %p204 = por %p202, %p203
      %p206 = scmp.ne.s32.totalorder %s191, %s205
      %p207 = scmp.eq.s32.totalorder %s24, 0
      %p208 = por %p206, %p207
      %s209 = ssub.s32 %s18, %s25
      %p210 = scmp.eq.s32.totalorder %s209, 0
      %s212 = sadd.s32 %s211, 1
      %s213 = scalar_select %p210, %s211, %s212
      %p216 = pneg %p210
      %p217 = scmp.eq.s32.totalorder %s18, 1
      %p218 = por %p216, %p217
      %p219 = scmp.ne.s32.totalorder %s211, %s214
      %p220 = scmp.eq.s32.totalorder %s18, 0
      %p221 = por %p219, %p220
      %p222 = scmp.ne.s32.totalorder %s211, %s214
      %p223 = scmp.eq.s32.totalorder %s23, 1
      %p224 = por %p222, %p223
      %p225 = scmp.ne.s32.totalorder %s214, %s215
      %p226 = scmp.eq.s32.totalorder %s23, 0
      %p227 = por %p225, %p226
      %p228 = scmp.ne.s32.totalorder %s214, %s215
      %p229 = scmp.eq.s32.totalorder %s24, 1
      %p230 = por %p228, %p229
      %p232 = scmp.ne.s32.totalorder %s215, %s231
      %p233 = scmp.eq.s32.totalorder %s24, 0
      %p234 = por %p232, %p233
      %p235 = scmp.le.s32.totalorder 1, %s18
      %p236 = scmp.lt.s32.totalorder %s18, 3
      %p237 = pnand %p235, %p236
      %p238 = pneg %p237
      // Predicated region
      $region9: #{tpu_custom_call.1} parent=5 // pred_check
        _
      $region10: #{tpu_custom_call.1} parent=5 // pred_check_branch
        %240 = sbr.rel (%p237) target = $region12
      $region11: #{tpu_custom_call.1} parent=5 // pred_region
        %s241 = ssub.s32 %s18, 1
        // Predicated region
        $region13: #{tpu_custom_call.1} parent=11 // pred_check
          %p242 = pneg %p117
        $region14: #{tpu_custom_call.1} parent=11 // pred_check_branch
          %244 = sbr.rel (%p242) target = $region16
        $region15: #{tpu_custom_call.1} parent=11 // pred_region
          _
        $region16: #{tpu_custom_call.1} parent=11 // pred_fallthru
          _
        // Predicated region
        $region17: #{tpu_custom_call.1} parent=11 // pred_check
          %p245 = pneg %p138
        $region18: #{tpu_custom_call.1} parent=11 // pred_check_branch
          %247 = sbr.rel (%p245) target = $region20
        $region19: #{tpu_custom_call.1} parent=11 // pred_region
          _
        $region20: #{tpu_custom_call.1} parent=11 // pred_fallthru
          _
        // Predicated region
        $region21: #{tpu_custom_call.1} parent=11 // pred_check
          %p248 = pneg %p159
        $region22: #{tpu_custom_call.1} parent=11 // pred_check_branch
          %250 = sbr.rel (%p248) target = $region24
        $region23: #{tpu_custom_call.1} parent=11 // pred_region
          _
        $region24: #{tpu_custom_call.1} parent=11 // pred_fallthru
          _
        // Predicated region
        $region25: #{tpu_custom_call.1} parent=11 // pred_check
          %p251 = pneg %p180
        $region26: #{tpu_custom_call.1} parent=11 // pred_check_branch
          %253 = sbr.rel (%p251) target = $region28
        $region27: #{tpu_custom_call.1} parent=11 // pred_region
          %s255 = ssub.s32 2048, 2048
          %256 = vsyncadd [#allocation3], %s255
          %s257 = sshll.u32 [#allocation2], 4
          %s258 = int_to_ptr.vmem [resolvable:$true] %s257
          %263 = dma.hbm_to_vmem [thread:$0]  %s6, 2048, %s258, [#allocation3], 128, 128, 8
        $region28: #{tpu_custom_call.1} parent=11 // pred_fallthru
          _
        // Predicated region
        $region29: #{tpu_custom_call.1} parent=11 // pred_check
          %p264 = pneg %p201
        $region30: #{tpu_custom_call.1} parent=11 // pred_check_branch
          %266 = sbr.rel (%p264) target = $region32
        $region31: #{tpu_custom_call.1} parent=11 // pred_region
          _
        $region32: #{tpu_custom_call.1} parent=11 // pred_fallthru
          _
      $region12: #{tpu_custom_call.1} parent=5 // pred_fallthru
        _
      %p267 = scmp.lt.s32.totalorder %s18, 2
      // Predicated region
      $region33: #{tpu_custom_call.1} parent=5 // pred_check
        %p268 = pneg %p267
      $region34: #{tpu_custom_call.1} parent=5 // pred_check_branch
        %270 = sbr.rel (%p268) target = $region36
      $region35: #{tpu_custom_call.1} parent=5 // pred_region
        // Predicated region
        $region37: #{tpu_custom_call.1} parent=35 // pred_check
          %p271 = pneg %p38
        $region38: #{tpu_custom_call.1} parent=35 // pred_check_branch
          %273 = sbr.rel (%p271) target = $region40
        $region39: #{tpu_custom_call.1} parent=35 // pred_region
          %p274 = scmp.lt.s32.totalorder %s18, 1
          %s275 = scalar_select %p274, %s18, 1
          %s276 = smul.addr %s275, 8
          %s277 = scalar_lea.vmem %s0, %s276
        $region40: #{tpu_custom_call.1} parent=35 // pred_fallthru
          _
        // Predicated region
        $region41: #{tpu_custom_call.1} parent=35 // pred_check
          %p278 = pneg %p64
        $region42: #{tpu_custom_call.1} parent=35 // pred_check_branch
          %280 = sbr.rel (%p278) target = $region44
        $region43: #{tpu_custom_call.1} parent=35 // pred_region
          %p281 = scmp.lt.s32.totalorder %s18, 1
          %s282 = scalar_select %p281, %s18, 1
          %s283 = smul.addr %s282, 8
          %s284 = scalar_lea.vmem %s1, %s283
        $region44: #{tpu_custom_call.1} parent=35 // pred_fallthru
          _
        // Predicated region
        $region45: #{tpu_custom_call.1} parent=35 // pred_check
          %p285 = pneg %p90
        $region46: #{tpu_custom_call.1} parent=35 // pred_check_branch
          %287 = sbr.rel (%p285) target = $region48
        $region47: #{tpu_custom_call.1} parent=35 // pred_region
          %p288 = scmp.lt.s32.totalorder %s18, 1
          %s289 = scalar_select %p288, %s18, 1
          %s290 = smul.addr %s289, 8
          %s291 = scalar_lea.vmem %s2, %s290
        $region48: #{tpu_custom_call.1} parent=35 // pred_fallthru
          _
      $region36: #{tpu_custom_call.1} parent=5 // pred_fallthru
        _
      %p292 = scmp.le.s32.totalorder 1, %s18
      %p293 = scmp.lt.s32.totalorder %s18, 3
      %p294 = pnand %p292, %p293
      %p295 = pneg %p294
      // Predicated region
      $region49: #{tpu_custom_call.1} parent=5 // pred_check
        _
      $region50: #{tpu_custom_call.1} parent=5 // pred_check_branch
        %297 = sbr.rel (%p294) target = $region52
      $region51: #{tpu_custom_call.1} parent=5 // pred_region
        %s298 = ssub.s32 %s18, 1
        // Predicated region
        $region53: #{tpu_custom_call.1} parent=51 // pred_check
          %p299 = pneg %p180
        $region54: #{tpu_custom_call.1} parent=51 // pred_check_branch
          %301 = sbr.rel (%p299) target = $region56
        $region55: #{tpu_custom_call.1} parent=51 // pred_region
          %302 = dma.done [#allocation3], 2048
        $region56: #{tpu_custom_call.1} parent=51 // pred_fallthru
          _
        %p303 = scmp.lt.s32.totalorder %s23, 1
        %s304 = scalar_select %p303, %s23, 1
        %s305 = smul.addr %s304, 8
        %s306 = scalar_lea.vmem %s0, %s305
        %p307 = pneg %p44
        %p308 = pneg %p41
        %p309 = scmp.lt.s32.totalorder %s23, 1
        %s310 = scalar_select %p309, %s23, 1
        %s311 = smul.addr %s310, 8
        %s312 = scalar_lea.vmem %s1, %s311
        %p313 = pneg %p70
        %p314 = pneg %p67
        %p315 = scmp.lt.s32.totalorder %s23, 1
        %s316 = scalar_select %p315, %s23, 1
        %s317 = smul.addr %s316, 8
        %s318 = scalar_lea.vmem %s2, %s317
        %p319 = pneg %p96
        %p320 = pneg %p93
        %p321 = pneg %p117
        %p322 = pneg %p114
        %p323 = pneg %p138
        %p324 = pneg %p135
        %p325 = pneg %p159
        %p326 = pneg %p156
        %p327 = pneg %p180
        %p328 = pneg %p177
        %p329 = pneg %p201
        %p330 = pneg %p198
        %p331 = pneg %p227
        %p332 = pneg %p224
        %s333 = sand.u32 %s214, 1
        %s334 = scalar_lea.sflag [#allocation4], %s333
        %s335 = sand.u32 %s214, 1
        %s336 = smul.addr %s335, 8
        %s337 = scalar_lea.vmem [#allocation5], %s336
        %p338 = scmp.lt.s32.totalorder %s23, 1
        %s339 = scalar_select %p338, %s23, 1
        %s340 = smul.addr %s339, 8
        %s341 = scalar_lea.vmem %s0, %s340
        %p342 = scmp.lt.s32.totalorder %s23, 1
        %s343 = scalar_select %p342, %s23, 1
        %s344 = smul.addr %s343, 8
        %s345 = scalar_lea.vmem %s1, %s344
        %p346 = scmp.lt.s32.totalorder %s23, 1
        %s347 = scalar_select %p346, %s23, 1
        %s348 = smul.addr %s347, 8
        %s349 = scalar_lea.vmem %s2, %s348
        %v350 = vld [vmem:[%s341] sm:$0xff]
        %v351 = vld [vmem:[%s345] sm:$0xff]
        %v352 = vlaneseq
        %v353 = vand.u32 %v352, 127
        %v354 = vlaneseq
        %v355 = vshrl.u32 %v354, 7
        %v356 = vsub.s32 0, %v355
        %v357 = vrot.slane %v350, %v356
        %359 = vbcast.lane.b32.xlu0 %v357, 256
        %v360 = vpop.permute.xlu0 %359
        %v361 = vlaneseq
        %v362 = vshrl.u32 %v361, 7
        %v363 = vsub.s32 1, %v362
        %v364 = vrot.slane %v350, %v363
        %366 = vbcast.lane.b32.xlu0 %v364, 256
        %v367 = vpop.permute.xlu0 %366
        %v368 = vlaneseq
        %v369 = vshrl.u32 %v368, 7
        %v370 = vsub.s32 2, %v369
        %v371 = vrot.slane %v350, %v370
        %373 = vbcast.lane.b32.xlu0 %v371, 256
        %v374 = vpop.permute.xlu0 %373
        %v375 = vlaneseq
        %v376 = vshrl.u32 %v375, 7
        %v377 = vsub.s32 3, %v376
        %v378 = vrot.slane %v350, %v377
        %380 = vbcast.lane.b32.xlu0 %v378, 256
        %v381 = vpop.permute.xlu0 %380
        %v382 = vlaneseq
        %v383 = vshrl.u32 %v382, 7
        %v384 = vsub.s32 4, %v383
        %v385 = vrot.slane %v350, %v384
        %387 = vbcast.lane.b32.xlu0 %v385, 256
        %v388 = vpop.permute.xlu0 %387
        %v389 = vlaneseq
        %v390 = vshrl.u32 %v389, 7
        %v391 = vsub.s32 5, %v390
        %v392 = vrot.slane %v350, %v391
        %394 = vbcast.lane.b32.xlu0 %v392, 256
        %v395 = vpop.permute.xlu0 %394
        %v396 = vlaneseq
        %v397 = vshrl.u32 %v396, 7
        %v398 = vsub.s32 6, %v397
        %v399 = vrot.slane %v350, %v398
        %401 = vbcast.lane.b32.xlu0 %v399, 256
        %v402 = vpop.permute.xlu0 %401
        %v403 = vlaneseq
        %v404 = vshrl.u32 %v403, 7
        %v405 = vsub.s32 7, %v404
        %v406 = vrot.slane %v350, %v405
        %408 = vbcast.lane.b32.xlu0 %v406, 256
        %v409 = vpop.permute.xlu0 %408
        %v410 = vlaneseq
        %v411 = vshrl.u32 %v410, 7
        %v412 = vsub.s32 0, %v411
        %v413 = vrot.slane %v351, %v412
        %415 = vbcast.lane.b32.xlu0 %v413, 256
        %v416 = vpop.permute.xlu0 %415
        %v417 = vlaneseq
        %v418 = vshrl.u32 %v417, 7
        %v419 = vsub.s32 1, %v418
        %v420 = vrot.slane %v351, %v419
        %422 = vbcast.lane.b32.xlu0 %v420, 256
        %v423 = vpop.permute.xlu0 %422
        %v424 = vlaneseq
        %v425 = vshrl.u32 %v424, 7
        %v426 = vsub.s32 2, %v425
        %v427 = vrot.slane %v351, %v426
        %429 = vbcast.lane.b32.xlu0 %v427, 256
        %v430 = vpop.permute.xlu0 %429
        %v431 = vlaneseq
        %v432 = vshrl.u32 %v431, 7
        %v433 = vsub.s32 3, %v432
        %v434 = vrot.slane %v351, %v433
        %436 = vbcast.lane.b32.xlu0 %v434, 256
        %v437 = vpop.permute.xlu0 %436
        %v438 = vlaneseq
        %v439 = vshrl.u32 %v438, 7
        %v440 = vsub.s32 4, %v439
        %v441 = vrot.slane %v351, %v440
        %443 = vbcast.lane.b32.xlu0 %v441, 256
        %v444 = vpop.permute.xlu0 %443
        %v445 = vlaneseq
        %v446 = vshrl.u32 %v445, 7
        %v447 = vsub.s32 5, %v446
        %v448 = vrot.slane %v351, %v447
        %450 = vbcast.lane.b32.xlu0 %v448, 256
        %v451 = vpop.permute.xlu0 %450
        %v452 = vlaneseq
        %v453 = vshrl.u32 %v452, 7
        %v454 = vsub.s32 6, %v453
        %v455 = vrot.slane %v351, %v454
        %457 = vbcast.lane.b32.xlu0 %v455, 256
        %v458 = vpop.permute.xlu0 %457
        %v459 = vlaneseq
        %v460 = vshrl.u32 %v459, 7
        %v461 = vsub.s32 7, %v460
        %v462 = vrot.slane %v351, %v461
        %464 = vbcast.lane.b32.xlu0 %v462, 256
        %v465 = vpop.permute.xlu0 %464
        %vm466 = vcmp.eq.s32.totalorder %v360, %v353
        %vm467 = vcmp.eq.s32.totalorder %v367, %v353
        %vm468 = vcmp.eq.s32.totalorder %v374, %v353
        %vm469 = vcmp.eq.s32.totalorder %v381, %v353
        %vm470 = vcmp.eq.s32.totalorder %v388, %v353
        %vm471 = vcmp.eq.s32.totalorder %v395, %v353
        %vm472 = vcmp.eq.s32.totalorder %v402, %v353
        %vm473 = vcmp.eq.s32.totalorder %v409, %v353
        %vm474 = vcmp.eq.s32.totalorder %v416, %v353
        %vm475 = vcmp.eq.s32.totalorder %v423, %v353
        %vm476 = vcmp.eq.s32.totalorder %v430, %v353
        %vm477 = vcmp.eq.s32.totalorder %v437, %v353
        %vm478 = vcmp.eq.s32.totalorder %v444, %v353
        %vm479 = vcmp.eq.s32.totalorder %v451, %v353
        %vm480 = vcmp.eq.s32.totalorder %v458, %v353
        %vm481 = vcmp.eq.s32.totalorder %v465, %v353
        %v482 = vsel %vm466, 1, 0
        %v483 = vsel %vm467, 1, 0
        %v484 = vsel %vm468, 1, 0
        %v485 = vsel %vm469, 1, 0
        %v486 = vsel %vm470, 1, 0
        %v487 = vsel %vm471, 1, 0
        %v488 = vsel %vm472, 1, 0
        %v489 = vsel %vm473, 1, 0
        %v490 = vsel %vm474, 1, 0
        %v491 = vsel %vm475, 1, 0
        %v492 = vsel %vm476, 1, 0
        %v493 = vsel %vm477, 1, 0
        %v494 = vsel %vm478, 1, 0
        %v495 = vsel %vm479, 1, 0
        %v496 = vsel %vm480, 1, 0
        %v497 = vsel %vm481, 1, 0
        %v498 = vcvt.s32.f32 %v482
        %v499 = vcvt.s32.f32 %v483
        %v500 = vcvt.s32.f32 %v484
        %v501 = vcvt.s32.f32 %v485
        %v502 = vcvt.s32.f32 %v486
        %v503 = vcvt.s32.f32 %v487
        %v504 = vcvt.s32.f32 %v488
        %v505 = vcvt.s32.f32 %v489
        %v506 = vcvt.s32.f32 %v490
        %v507 = vcvt.s32.f32 %v491
        %v508 = vcvt.s32.f32 %v492
        %v509 = vcvt.s32.f32 %v493
        %v510 = vcvt.s32.f32 %v494
        %v511 = vcvt.s32.f32 %v495
        %v512 = vcvt.s32.f32 %v496
        %v513 = vcvt.s32.f32 %v497
        %vm514 = vcmask 457728
        %v515 = vsel %vm514, %v498, 0.0
        %v516 = vrot.slane %v515, 4
        %v517 = vadd.f32 %v515, %v516
        %v518 = vrot.slane %v517, 2
        %v519 = vadd.f32 %v517, %v518
        %v520 = vrot.slane %v519, 1
        %v521 = vadd.f32 %v519, %v520
        %v522 = vsel %vm514, %v499, 0.0
        %v523 = vrot.slane %v522, 4
        %v524 = vadd.f32 %v522, %v523
        %v525 = vrot.slane %v524, 2
        %v526 = vadd.f32 %v524, %v525
        %v527 = vrot.slane %v526, 1
        %v528 = vadd.f32 %v526, %v527
        %v529 = vsel %vm514, %v500, 0.0
        %v530 = vrot.slane %v529, 4
        %v531 = vadd.f32 %v529, %v530
        %v532 = vrot.slane %v531, 2
        %v533 = vadd.f32 %v531, %v532
        %v534 = vrot.slane %v533, 1
        %v535 = vadd.f32 %v533, %v534
        %v536 = vsel %vm514, %v501, 0.0
        %v537 = vrot.slane %v536, 4
        %v538 = vadd.f32 %v536, %v537
        %v539 = vrot.slane %v538, 2
        %v540 = vadd.f32 %v538, %v539
        %v541 = vrot.slane %v540, 1
        %v542 = vadd.f32 %v540, %v541
        %v543 = vsel %vm514, %v502, 0.0
        %v544 = vrot.slane %v543, 4
        %v545 = vadd.f32 %v543, %v544
        %v546 = vrot.slane %v545, 2
        %v547 = vadd.f32 %v545, %v546
        %v548 = vrot.slane %v547, 1
        %v549 = vadd.f32 %v547, %v548
        %v550 = vsel %vm514, %v503, 0.0
        %v551 = vrot.slane %v550, 4
        %v552 = vadd.f32 %v550, %v551
        %v553 = vrot.slane %v552, 2
        %v554 = vadd.f32 %v552, %v553
        %v555 = vrot.slane %v554, 1
        %v556 = vadd.f32 %v554, %v555
        %v557 = vsel %vm514, %v504, 0.0
        %v558 = vrot.slane %v557, 4
        %v559 = vadd.f32 %v557, %v558
        %v560 = vrot.slane %v559, 2
        %v561 = vadd.f32 %v559, %v560
        %v562 = vrot.slane %v561, 1
        %v563 = vadd.f32 %v561, %v562
        %v564 = vsel %vm514, %v505, 0.0
        %v565 = vrot.slane %v564, 4
        %v566 = vadd.f32 %v564, %v565
        %v567 = vrot.slane %v566, 2
        %v568 = vadd.f32 %v566, %v567
        %v569 = vrot.slane %v568, 1
        %v570 = vadd.f32 %v568, %v569
        %v571 = vsel %vm514, %v506, 0.0
        %v572 = vrot.slane %v571, 4
        %v573 = vadd.f32 %v571, %v572
        %v574 = vrot.slane %v573, 2
        %v575 = vadd.f32 %v573, %v574
        %v576 = vrot.slane %v575, 1
        %v577 = vadd.f32 %v575, %v576
        %v578 = vsel %vm514, %v507, 0.0
        %v579 = vrot.slane %v578, 4
        %v580 = vadd.f32 %v578, %v579
        %v581 = vrot.slane %v580, 2
        %v582 = vadd.f32 %v580, %v581
        %v583 = vrot.slane %v582, 1
        %v584 = vadd.f32 %v582, %v583
        %v585 = vsel %vm514, %v508, 0.0
        %v586 = vrot.slane %v585, 4
        %v587 = vadd.f32 %v585, %v586
        %v588 = vrot.slane %v587, 2
        %v589 = vadd.f32 %v587, %v588
        %v590 = vrot.slane %v589, 1
        %v591 = vadd.f32 %v589, %v590
        %v592 = vsel %vm514, %v509, 0.0
        %v593 = vrot.slane %v592, 4
        %v594 = vadd.f32 %v592, %v593
        %v595 = vrot.slane %v594, 2
        %v596 = vadd.f32 %v594, %v595
        %v597 = vrot.slane %v596, 1
        %v598 = vadd.f32 %v596, %v597
        %v599 = vsel %vm514, %v510, 0.0
        %v600 = vrot.slane %v599, 4
        %v601 = vadd.f32 %v599, %v600
        %v602 = vrot.slane %v601, 2
        %v603 = vadd.f32 %v601, %v602
        %v604 = vrot.slane %v603, 1
        %v605 = vadd.f32 %v603, %v604
        %v606 = vsel %vm514, %v511, 0.0
        %v607 = vrot.slane %v606, 4
        %v608 = vadd.f32 %v606, %v607
        %v609 = vrot.slane %v608, 2
        %v610 = vadd.f32 %v608, %v609
        %v611 = vrot.slane %v610, 1
        %v612 = vadd.f32 %v610, %v611
        %v613 = vsel %vm514, %v512, 0.0
        %v614 = vrot.slane %v613, 4
        %v615 = vadd.f32 %v613, %v614
        %v616 = vrot.slane %v615, 2
        %v617 = vadd.f32 %v615, %v616
        %v618 = vrot.slane %v617, 1
        %v619 = vadd.f32 %v617, %v618
        %v620 = vsel %vm514, %v513, 0.0
        %v621 = vrot.slane %v620, 4
        %v622 = vadd.f32 %v620, %v621
        %v623 = vrot.slane %v622, 2
        %v624 = vadd.f32 %v622, %v623
        %v625 = vrot.slane %v624, 1
        %v626 = vadd.f32 %v624, %v625
        %v627 = vld [vmem:[%s3] sm:$0xff]
        %v628 = vld [vmem:[%s3 + $0x8] sm:$0xff]
        %v629 = vld [vmem:[%s3 + $0x10] sm:$0xff]
        %v630 = vld [vmem:[%s3 + $0x18] sm:$0xff]
        %v631 = vld [vmem:[%s3 + $0x20] sm:$0xff]
        %v632 = vld [vmem:[%s3 + $0x28] sm:$0xff]
        %v633 = vld [vmem:[%s3 + $0x30] sm:$0xff]
        %vm650 = vcmask 1041409
        %v651 = vsel %vm650, %v528, %v521
        %vm652 = vcmask 1042434
        %v653 = vsel %vm652, %v535, %v651
        %vm654 = vcmask 1043459
        %v655 = vsel %vm654, %v542, %v653
        %vm656 = vcmask 1044484
        %v657 = vsel %vm656, %v549, %v655
        %vm658 = vcmask 1045509
        %v659 = vsel %vm658, %v556, %v657
        %vm660 = vcmask 1046534
        %v661 = vsel %vm660, %v563, %v659
        %vm662 = vcmask 1047559
        %v663 = vsel %vm662, %v570, %v661
        %v664 = vsel %vm650, %v584, %v577
        %v665 = vsel %vm652, %v591, %v664
        %v666 = vsel %vm654, %v598, %v665
        %v667 = vsel %vm656, %v605, %v666
        %v668 = vsel %vm658, %v612, %v667
        %v669 = vsel %vm660, %v619, %v668
        %v670 = vsel %vm662, %v626, %v669
        %v671 = vsel %vm514, %v663, 0
        %v673 = vsel %vm514, %v670, 0
        %675 = vmatprep.subr.mxu0 0.0
        %676 = vmatpush1.msra.mxu0 %v627
        %677 = vmatprep.subr.mxu0 0.0
        %678 = vmatpush1.msra.mxu0 %v628
        %679 = vmatprep.subr.mxu0 0.0
        %680 = vmatpush1.msra.mxu0 %v629
        %681 = vmatprep.subr.mxu0 0.0
        %682 = vmatpush1.msra.mxu0 %v630
        %683 = vmatprep.subr.mxu0 0.0
        %684 = vmatpush1.msra.mxu0 %v631
        %685 = vmatprep.subr.mxu0 0.0
        %686 = vmatpush1.msra.mxu0 %v632
        %687 = vmatprep.subr.mxu0 0.0
        %688 = vmatpush1.msra.mxu0 %v633
        %689 = vmatprep.subr.mxu0 0.0
        %690 = vmatpush1.msra.mxu0 0.0
        %691 = vmatprep.subr.mxu0 0.0
        %692 = vmatpush1.msra.mxu0 0.0
        %693 = vmatprep.subr.mxu0 0.0
        %694 = vmatpush1.msra.mxu0 0.0
        %695 = vmatprep.subr.mxu0 0.0
        %696 = vmatpush1.msra.mxu0 0.0
        %697 = vmatprep.subr.mxu0 0.0
        %698 = vmatpush1.msra.mxu0 0.0
        %699 = vmatprep.subr.mxu0 0.0
        %700 = vmatpush1.msra.mxu0 0.0
        %701 = vmatprep.subr.mxu0 0.0
        %702 = vmatpush1.msra.mxu0 0.0
        %703 = vmatprep.subr.mxu0 0.0
        %704 = vmatpush1.msra.mxu0 0.0
        %705 = vmatprep.subr.mxu0 0.0
        %706 = vmatpush1.msra.mxu0 0.0
        %707 = vmatprep.subr.mxu0 0.0
        %708 = vmatpush1.msra.mxu0 0.0
        %709 = vmatprep.subr.mxu0 0.0
        %710 = vmatpush1.msra.mxu0 0.0
        %711 = vmatprep.subr.mxu0 0.0
        %712 = vmatpush1.msra.mxu0 0.0
        %713 = vmatprep.subr.mxu0 0.0
        %714 = vmatpush1.msra.mxu0 0.0
        %715 = vmatprep.subr.mxu0 0.0
        %716 = vmatpush1.msra.mxu0 0.0
        %717 = vmatprep.subr.mxu0 0.0
        %718 = vmatpush1.msra.mxu0 0.0
        %719 = vmatprep.subr.mxu0 0.0
        %720 = vmatpush1.msra.mxu0 0.0
        %721 = vmatprep.subr.mxu0 0.0
        %722 = vmatpush1.msra.mxu0 0.0
        %723 = vmatprep.subr.mxu0 0.0
        %724 = vmatpush1.msra.mxu0 0.0
        %725 = vmatprep.subr.mxu0 0.0
        %726 = vmatpush1.msra.mxu0 0.0
        %727 = vmatprep.subr.mxu0 0.0
        %728 = vmatpush1.msra.mxu0 0.0
        %729 = vmatprep.subr.mxu0 0.0
        %730 = vmatpush1.msra.mxu0 0.0
        %731 = vmatprep.subr.mxu0 0.0
        %732 = vmatpush1.msra.mxu0 0.0
        %733 = vmatprep.subr.mxu0 0.0
        %734 = vmatpush1.msra.mxu0 0.0
        %735 = vmatprep.subr.mxu0 0.0
        %736 = vmatpush1.msra.mxu0 0.0
        %737 = vmatprep.subr.mxu0 0.0
        %738 = vmatpush1.msra.mxu0 0.0
        %739 = vmatprep.mubr.f32.mxu0 0.0
        %740 = vmatmul.mubr.f32.gmra.mrb[0].mxu0 %v671
        %v741 = vpop.f32.mrb[0].mxu0
        %v742 = vadd.f32 0.0, %v741
        %v743 = vpop.f32.mrb[0].mxu0
        %744 = vmatprep.mubr.f32.mxu0 0.0
        %745 = vmatmul.mubr.f32.gmra.mrb[0].mxu0 %v673
        %v746 = vpop.f32.mrb[0].mxu0
        %v747 = vadd.f32 0.0, %v746
        %v748 = vpop.f32.mrb[0].mxu0
        %749 = vdwg.mxu0
        %v750 = vld [vmem:[%s349] sm:$0xff]
        %752 = vset.pattern.permute.xlu0 0
        %753 = vperm.xlu0 %752, %v750
        %v754 = vpop.permute.xlu0 %753
        %v756 = vrcp.pop %v754
        %v757 = vmul.f32 %v742, %v756
        %758 = vset.pattern.permute.xlu0 1
        %759 = vperm.xlu0 %758, %v750
        %v760 = vpop.permute.xlu0 %759
        %v762 = vrcp.pop %v760
        %v763 = vmul.f32 %v747, %v762
        %v764 = vld [vmem:[%s4] sm:$0xff]
        %v765 = vld [vmem:[%s4 + $0x8] sm:$0xff]
        %v766 = vld [vmem:[%s4 + $0x10] sm:$0xff]
        %v767 = vld [vmem:[%s4 + $0x18] sm:$0xff]
        %v768 = vld [vmem:[%s4 + $0x20] sm:$0xff]
        %v769 = vld [vmem:[%s4 + $0x28] sm:$0xff]
        %v770 = vld [vmem:[%s4 + $0x30] sm:$0xff]
        %v771 = vld [vmem:[%s4 + $0x38] sm:$0xff]
        %v772 = vld [vmem:[%s4 + $0x40] sm:$0xff]
        %v773 = vld [vmem:[%s4 + $0x48] sm:$0xff]
        %v774 = vld [vmem:[%s4 + $0x50] sm:$0xff]
        %v775 = vld [vmem:[%s4 + $0x58] sm:$0xff]
        %v776 = vld [vmem:[%s4 + $0x60] sm:$0xff]
        %v777 = vld [vmem:[%s4 + $0x68] sm:$0xff]
        %v778 = vld [vmem:[%s4 + $0x70] sm:$0xff]
        %v779 = vld [vmem:[%s4 + $0x78] sm:$0xff]
        %v780 = vld [vmem:[%s5] sm:$0x1]
        %v781 = vld [vmem:[#allocation2] sm:$0xff]
        %v782 = vld [vmem:[#allocation2 + $0x8] sm:$0xff]
        %v783 = vld [vmem:[#allocation2 + $0x10] sm:$0xff]
        %v784 = vld [vmem:[#allocation2 + $0x18] sm:$0xff]
        %v785 = vld [vmem:[#allocation2 + $0x20] sm:$0xff]
        %v786 = vld [vmem:[#allocation2 + $0x28] sm:$0xff]
        %v787 = vld [vmem:[#allocation2 + $0x30] sm:$0xff]
        %v788 = vld [vmem:[#allocation2 + $0x38] sm:$0xff]
        %v789 = vld [vmem:[#allocation2 + $0x40] sm:$0xff]
        %v790 = vld [vmem:[#allocation2 + $0x48] sm:$0xff]
        %v791 = vld [vmem:[#allocation2 + $0x50] sm:$0xff]
        %v792 = vld [vmem:[#allocation2 + $0x58] sm:$0xff]
        %v793 = vld [vmem:[#allocation2 + $0x60] sm:$0xff]
        %v794 = vld [vmem:[#allocation2 + $0x68] sm:$0xff]
        %v795 = vld [vmem:[#allocation2 + $0x70] sm:$0xff]
        %v796 = vld [vmem:[#allocation2 + $0x78] sm:$0xff]
        %v797 = vld [vmem:[%s7] sm:$0x1]
        %v798 = vsub.f32 %v757, %v763
        %v799 = vand.u32 2147483647, %v798
        %v800 = vmul.f32 %v757, %v763
        %802 = vrot.lane.b32.xlu0 %v763, 32
        %v803 = vpop.permute.xlu0 %802
        %806 = vrot.lane.b32.xlu0 %v799, 64
        %v807 = vpop.permute.xlu0 %806
        %810 = vrot.lane.b32.xlu0 %v800, 96
        %v811 = vpop.permute.xlu0 %810
        %vm813 = vcmask 261120
        %v814 = vsel %vm813, %v757, %v803
        %vm815 = vcmask 523264
        %v816 = vsel %vm815, %v814, %v807
        %vm817 = vcmask 785408
        %v818 = vsel %vm817, %v816, %v811
        %v820 = vlaneseq
        %v821 = vshrl.u32 %v820, 7
        %v822 = vsub.s32 0, %v821
        %v823 = vrot.slane %v780, %v822
        %825 = vmatprep.subr.mxu0 0.0
        %826 = vmatpush1.msra.mxu0 %v764
        %827 = vmatprep.subr.mxu0 0.0
        %828 = vmatpush1.msra.mxu0 %v765
        %829 = vmatprep.subr.mxu0 0.0
        %830 = vmatpush1.msra.mxu0 %v766
        %831 = vmatprep.subr.mxu0 0.0
        %832 = vmatpush1.msra.mxu0 %v767
        %833 = vmatprep.subr.mxu0 0.0
        %834 = vmatpush1.msra.mxu0 %v768
        %835 = vmatprep.subr.mxu0 0.0
        %836 = vmatpush1.msra.mxu0 %v769
        %837 = vmatprep.subr.mxu0 0.0
        %838 = vmatpush1.msra.mxu0 %v770
        %839 = vmatprep.subr.mxu0 0.0
        %840 = vmatpush1.msra.mxu0 %v771
        %841 = vmatprep.subr.mxu0 0.0
        %842 = vmatpush1.msra.mxu0 %v772
        %843 = vmatprep.subr.mxu0 0.0
        %844 = vmatpush1.msra.mxu0 %v773
        %845 = vmatprep.subr.mxu0 0.0
        %846 = vmatpush1.msra.mxu0 %v774
        %847 = vmatprep.subr.mxu0 0.0
        %848 = vmatpush1.msra.mxu0 %v775
        %849 = vmatprep.subr.mxu0 0.0
        %850 = vmatpush1.msra.mxu0 %v776
        %851 = vmatprep.subr.mxu0 0.0
        %852 = vmatpush1.msra.mxu0 %v777
        %853 = vmatprep.subr.mxu0 0.0
        %854 = vmatpush1.msra.mxu0 %v778
        %855 = vmatprep.subr.mxu0 0.0
        %856 = vmatpush1.msra.mxu0 %v779
        %857 = vmatprep.subr.mxu0 0.0
        %858 = vmatpush1.msra.mxu0 0.0
        %859 = vmatprep.subr.mxu0 0.0
        %860 = vmatpush1.msra.mxu0 0.0
        %861 = vmatprep.subr.mxu0 0.0
        %862 = vmatpush1.msra.mxu0 0.0
        %863 = vmatprep.subr.mxu0 0.0
        %864 = vmatpush1.msra.mxu0 0.0
        %865 = vmatprep.subr.mxu0 0.0
        %866 = vmatpush1.msra.mxu0 0.0
        %867 = vmatprep.subr.mxu0 0.0
        %868 = vmatpush1.msra.mxu0 0.0
        %869 = vmatprep.subr.mxu0 0.0
        %870 = vmatpush1.msra.mxu0 0.0
        %871 = vmatprep.subr.mxu0 0.0
        %872 = vmatpush1.msra.mxu0 0.0
        %873 = vmatprep.subr.mxu0 0.0
        %874 = vmatpush1.msra.mxu0 0.0
        %875 = vmatprep.subr.mxu0 0.0
        %876 = vmatpush1.msra.mxu0 0.0
        %877 = vmatprep.subr.mxu0 0.0
        %878 = vmatpush1.msra.mxu0 0.0
        %879 = vmatprep.subr.mxu0 0.0
        %880 = vmatpush1.msra.mxu0 0.0
        %881 = vmatprep.subr.mxu0 0.0
        %882 = vmatpush1.msra.mxu0 0.0
        %883 = vmatprep.subr.mxu0 0.0
        %884 = vmatpush1.msra.mxu0 0.0
        %885 = vmatprep.subr.mxu0 0.0
        %886 = vmatpush1.msra.mxu0 0.0
        %887 = vmatprep.subr.mxu0 0.0
        %888 = vmatpush1.msra.mxu0 0.0
        %889 = vmatprep.mubr.f32.mxu0 0.0
        %890 = vmatmul.mubr.f32.gmra.mrb[0].mxu0 %v818
        %v891 = vpop.f32.mrb[0].mxu0
        %v892 = vadd.f32 %v823, %v891
        %v893 = vpop.f32.mrb[0].mxu0
        %894 = vdwg.mxu0
        %v895 = vtanh.pop %v892
        %v897 = vlaneseq
        %v898 = vshrl.u32 %v897, 7
        %v899 = vsub.s32 0, %v898
        %v900 = vrot.slane %v797, %v899
        %902 = vmatprep.subr.mxu0 0.0
        %903 = vmatpush1.msra.mxu0 %v781
        %904 = vmatprep.subr.mxu0 0.0
        %905 = vmatpush1.msra.mxu0 %v782
        %906 = vmatprep.subr.mxu0 0.0
        %907 = vmatpush1.msra.mxu0 %v783
        %908 = vmatprep.subr.mxu0 0.0
        %909 = vmatpush1.msra.mxu0 %v784
        %910 = vmatprep.subr.mxu0 0.0
        %911 = vmatpush1.msra.mxu0 %v785
        %912 = vmatprep.subr.mxu0 0.0
        %913 = vmatpush1.msra.mxu0 %v786
        %914 = vmatprep.subr.mxu0 0.0
        %915 = vmatpush1.msra.mxu0 %v787
        %916 = vmatprep.subr.mxu0 0.0
        %917 = vmatpush1.msra.mxu0 %v788
        %918 = vmatprep.subr.mxu0 0.0
        %919 = vmatpush1.msra.mxu0 %v789
        %920 = vmatprep.subr.mxu0 0.0
        %921 = vmatpush1.msra.mxu0 %v790
        %922 = vmatprep.subr.mxu0 0.0
        %923 = vmatpush1.msra.mxu0 %v791
        %924 = vmatprep.subr.mxu0 0.0
        %925 = vmatpush1.msra.mxu0 %v792
        %926 = vmatprep.subr.mxu0 0.0
        %927 = vmatpush1.msra.mxu0 %v793
        %928 = vmatprep.subr.mxu0 0.0
        %929 = vmatpush1.msra.mxu0 %v794
        %930 = vmatprep.subr.mxu0 0.0
        %931 = vmatpush1.msra.mxu0 %v795
        %932 = vmatprep.subr.mxu0 0.0
        %933 = vmatpush1.msra.mxu0 %v796
        %934 = vmatprep.subr.mxu0 0.0
        %935 = vmatpush1.msra.mxu0 0.0
        %936 = vmatprep.subr.mxu0 0.0
        %937 = vmatpush1.msra.mxu0 0.0
        %938 = vmatprep.subr.mxu0 0.0
        %939 = vmatpush1.msra.mxu0 0.0
        %940 = vmatprep.subr.mxu0 0.0
        %941 = vmatpush1.msra.mxu0 0.0
        %942 = vmatprep.subr.mxu0 0.0
        %943 = vmatpush1.msra.mxu0 0.0
        %944 = vmatprep.subr.mxu0 0.0
        %945 = vmatpush1.msra.mxu0 0.0
        %946 = vmatprep.subr.mxu0 0.0
        %947 = vmatpush1.msra.mxu0 0.0
        %948 = vmatprep.subr.mxu0 0.0
        %949 = vmatpush1.msra.mxu0 0.0
        %950 = vmatprep.subr.mxu0 0.0
        %951 = vmatpush1.msra.mxu0 0.0
        %952 = vmatprep.subr.mxu0 0.0
        %953 = vmatpush1.msra.mxu0 0.0
        %954 = vmatprep.subr.mxu0 0.0
        %955 = vmatpush1.msra.mxu0 0.0
        %956 = vmatprep.subr.mxu0 0.0
        %957 = vmatpush1.msra.mxu0 0.0
        %958 = vmatprep.subr.mxu0 0.0
        %959 = vmatpush1.msra.mxu0 0.0
        %960 = vmatprep.subr.mxu0 0.0
        %961 = vmatpush1.msra.mxu0 0.0
        %962 = vmatprep.subr.mxu0 0.0
        %963 = vmatpush1.msra.mxu0 0.0
        %964 = vmatprep.subr.mxu0 0.0
        %965 = vmatpush1.msra.mxu0 0.0
        %966 = vmatprep.mubr.f32.mxu0 0.0
        %967 = vmatmul.mubr.f32.gmra.mrb[0].mxu0 %v895
        %v968 = vpop.f32.mrb[0].mxu0
        %v969 = vadd.f32 %v900, %v968
        %v970 = vpop.f32.mrb[0].mxu0
        %971 = vdwg.mxu0
        %972 = vst [vmem:[%s337] sm:$0xff] %v969
        %s973 = sand.u32 %s214, 1
        %s974 = scalar_lea.sflag [#allocation4], %s973
        %s975 = sand.u32 %s214, 1
        %s976 = smul.addr %s975, 8
        %s977 = scalar_lea.vmem [#allocation5], %s976
        // Predicated region
        $region57: #{tpu_custom_call.1} parent=51 // pred_check
          %p978 = pneg %p224
        $region58: #{tpu_custom_call.1} parent=51 // pred_check_branch
          %980 = sbr.rel (%p978) target = $region60
        $region59: #{tpu_custom_call.1} parent=51 // pred_region
          %s982 = ssub.s32 128, 128
          %983 = vsyncadd %s974, %s982
          %s984 = smul.addr %s23, 128
          %s985 = scalar_lea.hbm %s8, %s984
          %s987 = sshll.u32 %s977, 4
          %s988 = int_to_ptr.vmem [resolvable:$true] %s987
          %990 = dma.vmem_to_hbm [thread:$0]  %s988, 128, %s985, %s974
        $region60: #{tpu_custom_call.1} parent=51 // pred_fallthru
          _
      $region52: #{tpu_custom_call.1} parent=5 // pred_fallthru
        _
      %p991 = scmp.le.s32.totalorder 2, %s18
      // Predicated region
      $region61: #{tpu_custom_call.1} parent=5 // pred_check
        %p992 = pneg %p991
      $region62: #{tpu_custom_call.1} parent=5 // pred_check_branch
        %994 = sbr.rel (%p992) target = $region64
      $region63: #{tpu_custom_call.1} parent=5 // pred_region
        %s995 = ssub.s32 %s18, 2
        // Predicated region
        $region65: #{tpu_custom_call.1} parent=63 // pred_check
          %p996 = pneg %p230
        $region66: #{tpu_custom_call.1} parent=63 // pred_check_branch
          %998 = sbr.rel (%p996) target = $region68
        $region67: #{tpu_custom_call.1} parent=63 // pred_region
          %s999 = sand.u32 %s215, 1
          %s1000 = scalar_lea.sflag [#allocation4], %s999
          %s1001 = sand.u32 %s215, 1
          %s1002 = smul.addr %s1001, 8
          %s1003 = scalar_lea.vmem [#allocation5], %s1002
          %1004 = dma.done %s1000, 128
        $region68: #{tpu_custom_call.1} parent=63 // pred_fallthru
          _
      $region64: #{tpu_custom_call.1} parent=5 // pred_fallthru
        _
    $region6: #{tpu_custom_call.1} parent=1 // loop_footer
      %s22 = sadd.s32 1, %s18
    $region7: #{tpu_custom_call.1} parent=1 // loop_footer_branch
      %17 = sbr.rel target = $region3
    $region8: #{tpu_custom_call.1} parent=1 // loop_exit
      _
    %1005 = vsyncpa [#allocation3], 1
    %s1006 = scalar_lea.sflag [#allocation3], 1
    %1007 = vsyncpa %s1006, 1
    %1008 = vsyncpa [#allocation4], 1
    %s1009 = scalar_lea.sflag [#allocation4], 1
    %1010 = vsyncpa %s1009, 1

</llo_original>
